<compile_context>
chip_gen: v7x
topology: tpu7x:2x2x1
jax: 0.10.0
libtpu: 0.0.40
codegen_flags: <defaults>
</compile_context>

<pallas_src>
import jax
import jax.numpy as jnp
from jax.experimental import pallas as pl
from jax.experimental.pallas import tpu as pltpu


def _bn_train(v, gamma, beta, eps=1e-5):
    """BatchNorm1d, training mode (PyTorch default): per-channel stats over
    (batch, position), biased variance.  Single-pass stats, affine folded into
    one multiply-add.  v: (B, CH, N); gamma/beta: (CH, 1)."""
    inv_n = 1.0 / float(v.shape[0] * v.shape[2])
    mean = jnp.sum(v, axis=(0, 2), keepdims=True) * inv_n
    var = jnp.sum(v * v, axis=(0, 2), keepdims=True) * inv_n - mean * mean
    scale = gamma * jax.lax.rsqrt(var + eps)          # rsqrt -> EUP slot
    return v * scale + (beta - mean * scale)          # 2 VPU ops / element


def _gcn_layer_kernel(x_ref, adj_ref, w_all_ref, w_out_ref, pvec_ref,
                      out_ref, upd_ref):
    f32 = jnp.float32
    x = x_ref[...]                       # (B, C, N)  NCL, same layout as PyTorch
    w_all = w_all_ref[...]               # (B, 3S, C) = [cond | fw | bw] weights
    B, C, N = x.shape
    S = w_all.shape[1] // 3

    # Packed per-channel vectors: columns = [b_cond, g1, be1, b_gcn, g2, be2].
    pv = pvec_ref[...]                   # (max(S,C), 6)
    b_cond, g1, be1, b_gcn = pv[:S, 0:1], pv[:S, 1:2], pv[:S, 2:3], pv[:S, 3:4]
    g2, be2 = pv[:C, 4:5], pv[:C, 5:6]

    # ---- Stage 1 (fused): condense + fw-support + bw-support in ONE matmul.
    # z[b, s', n] = sum_c w_all[b, s', c] * x[b, c, n]            -> (B, 3S, N)
    z = jnp.einsum('bsc,bcn->bsn', w_all, x, preferred_element_type=f32)

    # condense path: bias + BN + relu, written straight into the update scratch
    upd_ref[:, :S, :] = jnp.maximum(_bn_train(z[:, :S, :] + b_cond, g1, be1), 0.0)

    # ---- Stage 2 (merged): BOTH adjacency matmuls as ONE batched dot_general.
    # Supports stacked along the (untiled) leading dim: [fw(b=0..B-1), bw(...)].
    sup = jnp.concatenate([z[:, S:2 * S, :], z[:, 2 * S:, :]], axis=0)  # (2B,S,N)
    # out[g, s, m] = sum_n sup[g, s, n] * A[g, m, n]   (A @ support, transposed)
    msg = jnp.einsum('gsn,gmn->gsm', sup, adj_ref[...],
                     preferred_element_type=f32)                        # (2B,S,N)
    msg = jnp.maximum(msg + b_gcn, 0.0)
    upd_ref[:, S:2 * S, :] = msg[:B]     # fw messages
    upd_ref[:, 2 * S:, :] = msg[B:]      # bw messages

    # ---- Stage 3 (fused): cat([cond, fw, bw], channel) + 1x1 conv in ONE matmul,
    # reading the update slab from scratch (no concatenate / extra temporary).
    pre = jnp.einsum('bcs,bsn->bcn', w_out_ref[...], upd_ref[...],
                     preferred_element_type=f32)                        # (B, C, N)
    pre = _bn_train(pre, g2, be2)

    # residual + relu, stored directly in NCL layout (no transposes anywhere)
    out_ref[...] = jnp.maximum(pre + x, 0.0)


def graph_convolution_layer(x, fw_a, bw_a, packed):
    """x: (B, in_size, N) NCL; fw_a/bw_a: (B, N, N). Returns (B, in_size, N)."""
    B, C, N = x.shape
    S = packed['w_all'].shape[1] // 3
    f32 = jnp.float32
    if x.dtype != f32:
        x = x.astype(f32)
    # Single adjacency operand for the merged stage-2 dot_general; ordering
    # [fw_A (all b), bw_A (all b)] matches the in-kernel support stacking.
    adj = jnp.concatenate([fw_a, bw_a], axis=0)
    if adj.dtype != f32:
        adj = adj.astype(f32)

    args = (x, adj, packed['w_all'], packed['w_out'], packed['pvec'])

    # Advisory cost for XLA's scheduler (stages 1+2+3 matmul FLOPs).
    flops = 2 * B * N * (3 * S * C + 2 * S * N + C * 3 * S)
    bytes_accessed = 4 * (x.size + adj.size + packed['w_all'].size
                          + packed['w_out'].size + packed['pvec'].size
                          + B * C * N)

    vmem = pl.BlockSpec(memory_space=pltpu.MemorySpace.VMEM)
    # Whole problem fits in one VMEM block -> no grid (avoids per-step overhead);
    # 3 fused matmul stages, both BNs and the residual run in one shot.
    return pl.pallas_call(
        _gcn_layer_kernel,
        out_shape=jax.ShapeDtypeStruct((B, C, N), f32),
        in_specs=[vmem] * len(args),
        out_specs=vmem,
        scratch_shapes=[pltpu.VMEM((B, 3 * S, N), f32)],   # stage-3 update slab
        cost_estimate=pl.CostEstimate(flops=flops, transcendentals=S + C,
                                      bytes_accessed=bytes_accessed),
    )(*args)


def init_params(key, B, in_size, state_size):
    """Deterministic synthetic parameters in 'raw' PyTorch-like layout.
    GraphConvolution re-creates its (B, in, out) weight each forward with
    xavier_normal(gain=0.02) on CUDA; here we fix it once deterministically."""
    C, S = in_size, state_size
    ks = jax.random.split(key, 5)
    # condense = Conv1d(C, S, 1): weight (S, C, 1) -> (S, C), bias (S,)
    w_cond = jax.random.normal(ks[0], (S, C), jnp.float32) / jnp.sqrt(float(C))
    b_cond = jax.random.normal(ks[1], (S,), jnp.float32) * 0.01
    # GCN weights (B, C, S), xavier_normal gain=0.02; bias constant 0
    xav = 0.02 * jnp.sqrt(2.0 / float(C * S + B * S))
    w_fw = jax.random.normal(ks[2], (B, C, S), jnp.float32) * xav
    w_bw = jax.random.normal(ks[3], (B, C, S), jnp.float32) * xav
    b_gcn = jnp.zeros((S,), jnp.float32)
    # final conv1d = Conv1d(3S, C, 1, bias=False): weight (C, 3S, 1) -> (C, 3S)
    w_out = jax.random.normal(ks[4], (C, 3 * S), jnp.float32) / jnp.sqrt(float(3 * S))
    # TODO(synk): self.dropout and self.test_conv are never used in forward(); omitted.
    return dict(
        w_cond=w_cond, b_cond=b_cond,
        g1=jnp.ones((S,), jnp.float32), be1=jnp.zeros((S,), jnp.float32),
        w_fw=w_fw, w_bw=w_bw, b_gcn=b_gcn,
        w_out=w_out,
        g2=jnp.ones((C,), jnp.float32), be2=jnp.zeros((C,), jnp.float32),
    )


def pack_params(p, B):
    """One-time packing into the fused kernel layout (done at init, not per call)."""
    S, C = p['w_cond'].shape
    P = max(S, C)
    w_all = jnp.concatenate([
        jnp.broadcast_to(p['w_cond'][None], (B, S, C)),   # shared condense weight
        jnp.transpose(p['w_fw'], (0, 2, 1)),              # per-batch GCN fw weight
        jnp.transpose(p['w_bw'], (0, 2, 1)),              # per-batch GCN bw weight
    ], axis=1)                                            # (B, 3S, C)

    def col(v):  # pad a per-channel vector to P rows, as one column
        return jnp.pad(v, (0, P - v.shape[0]))[:, None]

    # Columns: [b_cond, g1, be1, b_gcn, g2, be2]  -> ONE small (P, 6) operand.
    pvec = jnp.concatenate([col(p['b_cond']), col(p['g1']), col(p['be1']),
                            col(p['b_gcn']), col(p['g2']), col(p['be2'])], axis=1)
    return dict(
        w_all=w_all,
        w_out=jnp.broadcast_to(p['w_out'][None], (B, C, 3 * S)),   # (B, C, 3S)
        pvec=pvec,
    )


def reference_forward(x, fw_a, bw_a, p):
    """Pure-JAX reference mirroring the PyTorch module (no Pallas, raw params)."""
    def bn(v, g, b, eps=1e-5):  # v: (B, CH, N)
        m = jnp.mean(v, axis=(0, 2), keepdims=True)
        var = jnp.mean((v - m) ** 2, axis=(0, 2), keepdims=True)
        return (v - m) / jnp.sqrt(var + eps) * g.reshape(1, -1, 1) + b.reshape(1, -1, 1)

    xk = jnp.transpose(x, (0, 2, 1))                                   # (B, N, C)
    # condense
    cond = jnp.einsum('sc,bcn->bsn', p['w_cond'], x) + p['b_cond'].reshape(1, -1, 1)
    cond = jnp.maximum(bn(cond, p['g1'], p['be1']), 0.0)               # (B, S, N)
    # GCN forward
    sup_f = jnp.einsum('bnc,bcs->bns', xk, p['w_fw'])
    out_f = jnp.einsum('bmn,bns->bms', fw_a, sup_f) + p['b_gcn']
    fw_msg = jnp.maximum(jnp.transpose(out_f, (0, 2, 1)), 0.0)         # (B, S, N)
    # GCN backward
    sup_b = jnp.einsum('bnc,bcs->bns', xk, p['w_bw'])
    out_b = jnp.einsum('bmn,bns->bms', bw_a, sup_b) + p['b_gcn']
    bw_msg = jnp.maximum(jnp.transpose(out_b, (0, 2, 1)), 0.0)         # (B, S, N)
    # cat + conv1d + BN + residual + relu
    update = jnp.concatenate([cond, fw_msg, bw_msg], axis=1)           # (B, 3S, N)
    pre = jnp.einsum('cs,bsn->bcn', p['w_out'], update)
    pre = bn(pre, p['g2'], p['be2'])
    return jnp.maximum(pre + x, 0.0)


if __name__ == "__main__":
    B, in_size, state_size, N = 2, 16, 32, 8
    key = jax.random.PRNGKey(0)
    k_x, k_fa, k_p = jax.random.split(key, 3)

    x = jax.random.normal(k_x, (B, in_size, N), jnp.float32)
    fw_a = jax.random.uniform(k_fa, (B, N, N), jnp.float32)
    fw_a = fw_a / jnp.sum(fw_a, axis=-1, keepdims=True)      # row-normalized adjacency
    bw_a = jnp.transpose(fw_a, (0, 2, 1))
    bw_a = bw_a / jnp.sum(bw_a, axis=-1, keepdims=True)

    raw_params = init_params(k_p, B, in_size, state_size)
    packed_params = pack_params(raw_params, B)

    out = graph_convolution_layer(x, fw_a, bw_a, packed_params)
    out = jax.block_until_ready(out)

    ref = reference_forward(x, fw_a, bw_a, raw_params)
    assert out.shape == (B, in_size, N)
    assert jnp.allclose(out, ref, atol=1e-4, rtol=1e-4), "mismatch vs reference"
    print("KERNEL_OK")
</pallas_src>

<mosaic_0001>
module attributes {stable_mosaic.version = 11 : i64} {
  func.func @_gcn_layer_kernel(%arg0: memref<2x16x8xf32, #tpu.memory_space<vmem>>, %arg1: memref<4x8x8xf32, #tpu.memory_space<vmem>>, %arg2: memref<2x96x16xf32, #tpu.memory_space<vmem>>, %arg3: memref<2x16x96xf32, #tpu.memory_space<vmem>>, %arg4: memref<32x6xf32, #tpu.memory_space<vmem>>, %arg5: memref<2x16x8xf32, #tpu.memory_space<vmem>>, %arg6: memref<2x96x8xf32, #tpu.memory_space<vmem>>) attributes {dimension_semantics = [], scalar_prefetch = 0 : i64, scratch_operands = 1 : i64, tpu.core_type = #tpu.core_type<tc>} {
    %c0 = arith.constant 0 : index
    %c0_0 = arith.constant 0 : index
    %c0_1 = arith.constant 0 : index
    %0 = vector.load %arg0[%c0, %c0_0, %c0_1] : memref<2x16x8xf32, #tpu.memory_space<vmem>>, vector<2x16x8xf32>
    %c0_2 = arith.constant 0 : index
    %c0_3 = arith.constant 0 : index
    %c0_4 = arith.constant 0 : index
    %1 = vector.load %arg2[%c0_2, %c0_3, %c0_4] : memref<2x96x16xf32, #tpu.memory_space<vmem>>, vector<2x96x16xf32>
    %c0_5 = arith.constant 0 : index
    %c0_6 = arith.constant 0 : index
    %2 = vector.load %arg4[%c0_5, %c0_6] : memref<32x6xf32, #tpu.memory_space<vmem>>, vector<32x6xf32>
    %3 = vector.extract_strided_slice %2 {offsets = [0, 0], sizes = [32, 1], strides = [1, 1]} : vector<32x6xf32> to vector<32x1xf32>
    %4 = vector.extract_strided_slice %2 {offsets = [0, 1], sizes = [32, 1], strides = [1, 1]} : vector<32x6xf32> to vector<32x1xf32>
    %5 = vector.extract_strided_slice %2 {offsets = [0, 2], sizes = [32, 1], strides = [1, 1]} : vector<32x6xf32> to vector<32x1xf32>
    %6 = vector.extract_strided_slice %2 {offsets = [0, 3], sizes = [32, 1], strides = [1, 1]} : vector<32x6xf32> to vector<32x1xf32>
    %7 = vector.extract_strided_slice %2 {offsets = [0, 4], sizes = [16, 1], strides = [1, 1]} : vector<32x6xf32> to vector<16x1xf32>
    %8 = vector.extract_strided_slice %2 {offsets = [0, 5], sizes = [16, 1], strides = [1, 1]} : vector<32x6xf32> to vector<16x1xf32>
    "tpu.trace_start"() <{level = 10 : i32, message = "bsc,bcn->bsn"}> : () -> ()
    %cst = arith.constant dense<0.000000e+00> : vector<2x96x8xf32>
    %9 = tpu.matmul %1, %0, %cst {dimension_numbers = #tpu.dot_dimension_numbers<[2], [1], [1], [2], [0, 0, 0, 1, 1, 2], [0], [0]>} : vector<2x96x16xf32>, vector<2x16x8xf32>, vector<2x96x8xf32> -> vector<2x96x8xf32>
    "tpu.trace_stop"() : () -> ()
    %10 = vector.extract_strided_slice %9 {offsets = [0, 0, 0], sizes = [2, 32, 8], strides = [1, 1, 1]} : vector<2x96x8xf32> to vector<2x32x8xf32>
    %11 = vector.shape_cast %3 : vector<32x1xf32> to vector<1x32x1xf32>
    %12 = vector.broadcast %11 : vector<1x32x1xf32> to vector<2x32x8xf32>
    %13 = arith.addf %10, %12 : vector<2x32x8xf32>
    %cst_7 = arith.constant dense<0.000000e+00> : vector<32xf32>
    %14 = vector.multi_reduction <add>, %13, %cst_7 [0, 2] : vector<2x32x8xf32> to vector<32xf32>
    %15 = vector.shape_cast %14 : vector<32xf32> to vector<1x32x1xf32>
    %cst_8 = arith.constant 6.250000e-02 : f32
    %16 = vector.broadcast %cst_8 : f32 to vector<1x32x1xf32>
    %17 = arith.mulf %15, %16 : vector<1x32x1xf32>
    %18 = arith.mulf %13, %13 : vector<2x32x8xf32>
    %cst_9 = arith.constant dense<0.000000e+00> : vector<32xf32>
    %19 = vector.multi_reduction <add>, %18, %cst_9 [0, 2] : vector<2x32x8xf32> to vector<32xf32>
    %20 = vector.shape_cast %19 : vector<32xf32> to vector<1x32x1xf32>
    %cst_10 = arith.constant 6.250000e-02 : f32
    %21 = vector.broadcast %cst_10 : f32 to vector<1x32x1xf32>
    %22 = arith.mulf %20, %21 : vector<1x32x1xf32>
    %23 = arith.mulf %17, %17 : vector<1x32x1xf32>
    %24 = arith.subf %22, %23 : vector<1x32x1xf32>
    %cst_11 = arith.constant 9.99999974E-6 : f32
    %25 = vector.broadcast %cst_11 : f32 to vector<1x32x1xf32>
    %26 = arith.addf %24, %25 : vector<1x32x1xf32>
    %27 = math.rsqrt %26 : vector<1x32x1xf32>
    %28 = vector.shape_cast %4 : vector<32x1xf32> to vector<1x32x1xf32>
    %29 = arith.mulf %28, %27 : vector<1x32x1xf32>
    %30 = vector.broadcast %29 : vector<1x32x1xf32> to vector<2x32x8xf32>
    %31 = arith.mulf %13, %30 : vector<2x32x8xf32>
    %32 = arith.mulf %17, %29 : vector<1x32x1xf32>
    %33 = vector.shape_cast %5 : vector<32x1xf32> to vector<1x32x1xf32>
    %34 = arith.subf %33, %32 : vector<1x32x1xf32>
    %35 = vector.broadcast %34 : vector<1x32x1xf32> to vector<2x32x8xf32>
    %36 = arith.addf %31, %35 : vector<2x32x8xf32>
    %cst_12 = arith.constant 0.000000e+00 : f32
    %37 = vector.broadcast %cst_12 : f32 to vector<2x32x8xf32>
    %38 = arith.maximumf %36, %37 : vector<2x32x8xf32>
    %c0_13 = arith.constant 0 : index
    %c0_14 = arith.constant 0 : index
    %c0_15 = arith.constant 0 : index
    %39 = vector.load %arg6[%c0_13, %c0_14, %c0_15] : memref<2x96x8xf32, #tpu.memory_space<vmem>>, vector<2x32x8xf32>
    tpu.vector_store %arg6[%c0_13, %c0_14, %c0_15], %38 {strides = array<i32>} : memref<2x96x8xf32, #tpu.memory_space<vmem>>, vector<2x32x8xf32>,
    %40 = vector.extract_strided_slice %9 {offsets = [0, 32, 0], sizes = [2, 32, 8], strides = [1, 1, 1]} : vector<2x96x8xf32> to vector<2x32x8xf32>
    %41 = vector.extract_strided_slice %9 {offsets = [0, 64, 0], sizes = [2, 32, 8], strides = [1, 1, 1]} : vector<2x96x8xf32> to vector<2x32x8xf32>
    %42 = tpu.concatenate %40, %41 in 0 : vector<2x32x8xf32>, vector<2x32x8xf32> -> vector<4x32x8xf32>
    %c0_16 = arith.constant 0 : index
    %c0_17 = arith.constant 0 : index
    %c0_18 = arith.constant 0 : index
    %43 = vector.load %arg1[%c0_16, %c0_17, %c0_18] : memref<4x8x8xf32, #tpu.memory_space<vmem>>, vector<4x8x8xf32>
    "tpu.trace_start"() <{level = 10 : i32, message = "gsn,gmn->gsm"}> : () -> ()
    %cst_19 = arith.constant dense<0.000000e+00> : vector<4x32x8xf32>
    %44 = tpu.matmul %42, %43, %cst_19 {dimension_numbers = #tpu.dot_dimension_numbers<[2], [2], [1], [1], [0, 0, 0, 1, 1, 1], [0], [0]>} : vector<4x32x8xf32>, vector<4x8x8xf32>, vector<4x32x8xf32> -> vector<4x32x8xf32>
    "tpu.trace_stop"() : () -> ()
    %45 = vector.shape_cast %6 : vector<32x1xf32> to vector<1x32x1xf32>
    %46 = vector.broadcast %45 : vector<1x32x1xf32> to vector<4x32x8xf32>
    %47 = arith.addf %44, %46 : vector<4x32x8xf32>
    %cst_20 = arith.constant 0.000000e+00 : f32
    %48 = vector.broadcast %cst_20 : f32 to vector<4x32x8xf32>
    %49 = arith.maximumf %47, %48 : vector<4x32x8xf32>
    %50 = vector.extract_strided_slice %49 {offsets = [0, 0, 0], sizes = [2, 32, 8], strides = [1, 1, 1]} : vector<4x32x8xf32> to vector<2x32x8xf32>
    %c0_21 = arith.constant 0 : index
    %c32 = arith.constant 32 : index
    %c0_22 = arith.constant 0 : index
    %51 = vector.load %arg6[%c0_21, %c32, %c0_22] : memref<2x96x8xf32, #tpu.memory_space<vmem>>, vector<2x32x8xf32>
    tpu.vector_store %arg6[%c0_21, %c32, %c0_22], %50 {strides = array<i32>} : memref<2x96x8xf32, #tpu.memory_space<vmem>>, vector<2x32x8xf32>,
    %52 = vector.extract_strided_slice %49 {offsets = [2, 0, 0], sizes = [2, 32, 8], strides = [1, 1, 1]} : vector<4x32x8xf32> to vector<2x32x8xf32>
    %c0_23 = arith.constant 0 : index
    %c64 = arith.constant 64 : index
    %c0_24 = arith.constant 0 : index
    %53 = vector.load %arg6[%c0_23, %c64, %c0_24] : memref<2x96x8xf32, #tpu.memory_space<vmem>>, vector<2x32x8xf32>
    tpu.vector_store %arg6[%c0_23, %c64, %c0_24], %52 {strides = array<i32>} : memref<2x96x8xf32, #tpu.memory_space<vmem>>, vector<2x32x8xf32>,
    %c0_25 = arith.constant 0 : index
    %c0_26 = arith.constant 0 : index
    %c0_27 = arith.constant 0 : index
    %54 = vector.load %arg3[%c0_25, %c0_26, %c0_27] : memref<2x16x96xf32, #tpu.memory_space<vmem>>, vector<2x16x96xf32>
    %c0_28 = arith.constant 0 : index
    %c0_29 = arith.constant 0 : index
    %c0_30 = arith.constant 0 : index
    %55 = vector.load %arg6[%c0_28, %c0_29, %c0_30] : memref<2x96x8xf32, #tpu.memory_space<vmem>>, vector<2x96x8xf32>
    "tpu.trace_start"() <{level = 10 : i32, message = "bcs,bsn->bcn"}> : () -> ()
    %cst_31 = arith.constant dense<0.000000e+00> : vector<2x16x8xf32>
    %56 = tpu.matmul %54, %55, %cst_31 {dimension_numbers = #tpu.dot_dimension_numbers<[2], [1], [1], [2], [0, 0, 0, 1, 1, 2], [0], [0]>} : vector<2x16x96xf32>, vector<2x96x8xf32>, vector<2x16x8xf32> -> vector<2x16x8xf32>
    "tpu.trace_stop"() : () -> ()
    %cst_32 = arith.constant dense<0.000000e+00> : vector<16xf32>
    %57 = vector.multi_reduction <add>, %56, %cst_32 [0, 2] : vector<2x16x8xf32> to vector<16xf32>
    %58 = vector.shape_cast %57 : vector<16xf32> to vector<1x16x1xf32>
    %cst_33 = arith.constant 6.250000e-02 : f32
    %59 = vector.broadcast %cst_33 : f32 to vector<1x16x1xf32>
    %60 = arith.mulf %58, %59 : vector<1x16x1xf32>
    %61 = arith.mulf %56, %56 : vector<2x16x8xf32>
    %cst_34 = arith.constant dense<0.000000e+00> : vector<16xf32>
    %62 = vector.multi_reduction <add>, %61, %cst_34 [0, 2] : vector<2x16x8xf32> to vector<16xf32>
    %63 = vector.shape_cast %62 : vector<16xf32> to vector<1x16x1xf32>
    %cst_35 = arith.constant 6.250000e-02 : f32
    %64 = vector.broadcast %cst_35 : f32 to vector<1x16x1xf32>
    %65 = arith.mulf %63, %64 : vector<1x16x1xf32>
    %66 = arith.mulf %60, %60 : vector<1x16x1xf32>
    %67 = arith.subf %65, %66 : vector<1x16x1xf32>
    %cst_36 = arith.constant 9.99999974E-6 : f32
    %68 = vector.broadcast %cst_36 : f32 to vector<1x16x1xf32>
    %69 = arith.addf %67, %68 : vector<1x16x1xf32>
    %70 = math.rsqrt %69 : vector<1x16x1xf32>
    %71 = vector.shape_cast %7 : vector<16x1xf32> to vector<1x16x1xf32>
    %72 = arith.mulf %71, %70 : vector<1x16x1xf32>
    %73 = vector.broadcast %72 : vector<1x16x1xf32> to vector<2x16x8xf32>
    %74 = arith.mulf %56, %73 : vector<2x16x8xf32>
    %75 = arith.mulf %60, %72 : vector<1x16x1xf32>
    %76 = vector.shape_cast %8 : vector<16x1xf32> to vector<1x16x1xf32>
    %77 = arith.subf %76, %75 : vector<1x16x1xf32>
    %78 = vector.broadcast %77 : vector<1x16x1xf32> to vector<2x16x8xf32>
    %79 = arith.addf %74, %78 : vector<2x16x8xf32>
    %80 = arith.addf %79, %0 : vector<2x16x8xf32>
    %cst_37 = arith.constant 0.000000e+00 : f32
    %81 = vector.broadcast %cst_37 : f32 to vector<2x16x8xf32>
    %82 = arith.maximumf %80, %81 : vector<2x16x8xf32>
    %c0_38 = arith.constant 0 : index
    %c0_39 = arith.constant 0 : index
    %c0_40 = arith.constant 0 : index
    %83 = vector.load %arg5[%c0_38, %c0_39, %c0_40] : memref<2x16x8xf32, #tpu.memory_space<vmem>>, vector<2x16x8xf32>
    tpu.vector_store %arg5[%c0_38, %c0_39, %c0_40], %82 {strides = array<i32>} : memref<2x16x8xf32, #tpu.memory_space<vmem>>, vector<2x16x8xf32>,
    return
  }
}

</mosaic_0001>

<llo_original>
// kernel: tpu_custom_call.1
$region0: #{tpu_custom_call.1}
  #allocation0 [shape = 'u32[]', space=smem, size = 0x4, offset = 0x4, fixed_abs, tag = 'smem constant byte address 0x4 - core index']
  #allocation1 [shape = 'u32[144,128]{1,0:T(1,128)}', space=vmem, size = 0x12000, scoped, tag = 'internal scratch']
  #allocation2 [shape = 'f32[2,96,8]{2,1,0:T(8,128)}', space=vmem, size = 0x18000, scoped, tag = 'scratch operand']
  %s0 = inlined_call_operand.vmem [shape: f32[2,16,8], index: 0, kind: input, shape index: {}]
  %s1 = inlined_call_operand.vmem [shape: f32[4,8,8], index: 1, kind: input, shape index: {}]
  %s2 = inlined_call_operand.vmem [shape: f32[2,96,16], index: 2, kind: input, shape index: {}]
  %s3 = inlined_call_operand.vmem [shape: f32[2,16,96], index: 3, kind: input, shape index: {}]
  %s4 = inlined_call_operand.vmem [shape: f32[32,6], index: 4, kind: input, shape index: {}]
  %s5 = inlined_call_operand.vmem [shape: f32[2,16,8], index: 5, kind: output, shape index: {}]
  %s6 = sld [smem:[#allocation0]]
  $region30: #{tpu_custom_call.1} parent=0
    _
  %s8 = ssub.s32 1, %s6
  %s9 = scalar_select 0, %s8, %s6
  // Predicated region
  $region2: #{tpu_custom_call.1} parent=0 // pred_check
    _
  $region3: #{tpu_custom_call.1} parent=0 // pred_check_branch
    %11 = sbr.rel (0) target = $region5
  $region4: #{tpu_custom_call.1} parent=0 // pred_region
    _
  $region5: #{tpu_custom_call.1} parent=0 // pred_fallthru
    _
  // Predicated region
  $region6: #{tpu_custom_call.1} parent=0 // pred_check
    _
  $region7: #{tpu_custom_call.1} parent=0 // pred_check_branch
    %13 = sbr.rel (0) target = $region9
  $region8: #{tpu_custom_call.1} parent=0 // pred_region
    _
  $region9: #{tpu_custom_call.1} parent=0 // pred_fallthru
    _
  // Predicated region
  $region10: #{tpu_custom_call.1} parent=0 // pred_check
    _
  $region11: #{tpu_custom_call.1} parent=0 // pred_check_branch
    %15 = sbr.rel (0) target = $region13
  $region12: #{tpu_custom_call.1} parent=0 // pred_region
    _
  $region13: #{tpu_custom_call.1} parent=0 // pred_fallthru
    _
  // Predicated region
  $region14: #{tpu_custom_call.1} parent=0 // pred_check
    _
  $region15: #{tpu_custom_call.1} parent=0 // pred_check_branch
    %17 = sbr.rel (0) target = $region17
  $region16: #{tpu_custom_call.1} parent=0 // pred_region
    _
  $region17: #{tpu_custom_call.1} parent=0 // pred_fallthru
    _
  // Predicated region
  $region18: #{tpu_custom_call.1} parent=0 // pred_check
    _
  $region19: #{tpu_custom_call.1} parent=0 // pred_check_branch
    %19 = sbr.rel (0) target = $region21
  $region20: #{tpu_custom_call.1} parent=0 // pred_region
    _
  $region21: #{tpu_custom_call.1} parent=0 // pred_fallthru
    _
  %v20 = vld [vmem:[%s0] sm:$0xff]
  %v21 = vld [vmem:[%s0 + $0x8] sm:$0xff]
  %v22 = vld [vmem:[%s0 + $0x10] sm:$0xff]
  %v23 = vld [vmem:[%s0 + $0x18] sm:$0xff]
  %v24 = vld [vmem:[%s2] sm:$0xff]
  %v25 = vld [vmem:[%s2 + $0x8] sm:$0xff]
  %v26 = vld [vmem:[%s2 + $0x10] sm:$0xff]
  %v27 = vld [vmem:[%s2 + $0x18] sm:$0xff]
  %v28 = vld [vmem:[%s2 + $0x20] sm:$0xff]
  %v29 = vld [vmem:[%s2 + $0x28] sm:$0xff]
  %v30 = vld [vmem:[%s2 + $0x30] sm:$0xff]
  %v31 = vld [vmem:[%s2 + $0x38] sm:$0xff]
  %v32 = vld [vmem:[%s2 + $0x40] sm:$0xff]
  %v33 = vld [vmem:[%s2 + $0x48] sm:$0xff]
  %v34 = vld [vmem:[%s2 + $0x50] sm:$0xff]
  %v35 = vld [vmem:[%s2 + $0x58] sm:$0xff]
  %v36 = vld [vmem:[%s2 + $0x60] sm:$0xff]
  %v37 = vld [vmem:[%s2 + $0x68] sm:$0xff]
  %v38 = vld [vmem:[%s2 + $0x70] sm:$0xff]
  %v39 = vld [vmem:[%s2 + $0x78] sm:$0xff]
  %v40 = vld [vmem:[%s2 + $0x80] sm:$0xff]
  %v41 = vld [vmem:[%s2 + $0x88] sm:$0xff]
  %v42 = vld [vmem:[%s2 + $0x90] sm:$0xff]
  %v43 = vld [vmem:[%s2 + $0x98] sm:$0xff]
  %v44 = vld [vmem:[%s2 + $0xa0] sm:$0xff]
  %v45 = vld [vmem:[%s2 + $0xa8] sm:$0xff]
  %v46 = vld [vmem:[%s2 + $0xb0] sm:$0xff]
  %v47 = vld [vmem:[%s2 + $0xb8] sm:$0xff]
  %v48 = vld [vmem:[%s4] sm:$0xff]
  %v49 = vld [vmem:[%s4 + $0x8] sm:$0xff]
  %v50 = vld [vmem:[%s4 + $0x10] sm:$0xff]
  %v51 = vld [vmem:[%s4 + $0x18] sm:$0xff]
  %vm52 = vcmask 130048
  %v54 = vsel %vm52, %v24, 0
  %v57 = vsel %vm52, %v25, 0
  %v60 = vsel %vm52, %v26, 0
  %v63 = vsel %vm52, %v27, 0
  %v66 = vsel %vm52, %v28, 0
  %v69 = vsel %vm52, %v29, 0
  %v72 = vsel %vm52, %v30, 0
  %v75 = vsel %vm52, %v31, 0
  %v78 = vsel %vm52, %v32, 0
  %v81 = vsel %vm52, %v33, 0
  %v84 = vsel %vm52, %v34, 0
  %v87 = vsel %vm52, %v35, 0
  %89 = vmatprep.subr.mxu0 0.0
  %90 = vmatpush1.msra.mxu0 %v20
  %91 = vmatprep.subr.mxu0 0.0
  %92 = vmatpush1.msra.mxu0 %v21
  %93 = vmatprep.subr.mxu0 0.0
  %94 = vmatpush1.msra.mxu0 0.0
  %95 = vmatprep.subr.mxu0 0.0
  %96 = vmatpush1.msra.mxu0 0.0
  %97 = vmatprep.subr.mxu0 0.0
  %98 = vmatpush1.msra.mxu0 0.0
  %99 = vmatprep.subr.mxu0 0.0
  %100 = vmatpush1.msra.mxu0 0.0
  %101 = vmatprep.subr.mxu0 0.0
  %102 = vmatpush1.msra.mxu0 0.0
  %103 = vmatprep.subr.mxu0 0.0
  %104 = vmatpush1.msra.mxu0 0.0
  %105 = vmatprep.subr.mxu0 0.0
  %106 = vmatpush1.msra.mxu0 0.0
  %107 = vmatprep.subr.mxu0 0.0
  %108 = vmatpush1.msra.mxu0 0.0
  %109 = vmatprep.subr.mxu0 0.0
  %110 = vmatpush1.msra.mxu0 0.0
  %111 = vmatprep.subr.mxu0 0.0
  %112 = vmatpush1.msra.mxu0 0.0
  %113 = vmatprep.subr.mxu0 0.0
  %114 = vmatpush1.msra.mxu0 0.0
  %115 = vmatprep.subr.mxu0 0.0
  %116 = vmatpush1.msra.mxu0 0.0
  %117 = vmatprep.subr.mxu0 0.0
  %118 = vmatpush1.msra.mxu0 0.0
  %119 = vmatprep.subr.mxu0 0.0
  %120 = vmatpush1.msra.mxu0 0.0
  %121 = vmatprep.subr.mxu0 0.0
  %122 = vmatpush1.msra.mxu0 0.0
  %123 = vmatprep.subr.mxu0 0.0
  %124 = vmatpush1.msra.mxu0 0.0
  %125 = vmatprep.subr.mxu0 0.0
  %126 = vmatpush1.msra.mxu0 0.0
  %127 = vmatprep.subr.mxu0 0.0
  %128 = vmatpush1.msra.mxu0 0.0
  %129 = vmatprep.subr.mxu0 0.0
  %130 = vmatpush1.msra.mxu0 0.0
  %131 = vmatprep.subr.mxu0 0.0
  %132 = vmatpush1.msra.mxu0 0.0
  %133 = vmatprep.subr.mxu0 0.0
  %134 = vmatpush1.msra.mxu0 0.0
  %135 = vmatprep.subr.mxu0 0.0
  %136 = vmatpush1.msra.mxu0 0.0
  %137 = vmatprep.subr.mxu0 0.0
  %138 = vmatpush1.msra.mxu0 0.0
  %139 = vmatprep.subr.mxu0 0.0
  %140 = vmatpush1.msra.mxu0 0.0
  %141 = vmatprep.subr.mxu0 0.0
  %142 = vmatpush1.msra.mxu0 0.0
  %143 = vmatprep.subr.mxu0 0.0
  %144 = vmatpush1.msra.mxu0 0.0
  %145 = vmatprep.subr.mxu0 0.0
  %146 = vmatpush1.msra.mxu0 0.0
  %147 = vmatprep.subr.mxu0 0.0
  %148 = vmatpush1.msra.mxu0 0.0
  %149 = vmatprep.subr.mxu0 0.0
  %150 = vmatpush1.msra.mxu0 0.0
  %151 = vmatprep.subr.mxu0 0.0
  %152 = vmatpush1.msra.mxu0 0.0
  %153 = vmatprep.mubr.f32.mxu0 0.0
  %154 = vmatmul.mubr.f32.gmra.mrb[0].mxu0 %v54
  %v155 = vpop.f32.mrb[0].mxu0
  %v156 = vadd.f32 0.0, %v155
  %v157 = vpop.f32.mrb[0].mxu0
  %158 = vmatprep.mubr.f32.mxu0 0.0
  %159 = vmatmul.mubr.f32.gmra.mrb[0].mxu0 %v57
  %v160 = vpop.f32.mrb[0].mxu0
  %v161 = vadd.f32 0.0, %v160
  %v162 = vpop.f32.mrb[0].mxu0
  %163 = vmatprep.mubr.f32.mxu0 0.0
  %164 = vmatmul.mubr.f32.gmra.mrb[0].mxu0 %v60
  %v165 = vpop.f32.mrb[0].mxu0
  %v166 = vadd.f32 0.0, %v165
  %v167 = vpop.f32.mrb[0].mxu0
  %168 = vmatprep.mubr.f32.mxu0 0.0
  %169 = vmatmul.mubr.f32.gmra.mrb[0].mxu0 %v63
  %v170 = vpop.f32.mrb[0].mxu0
  %v171 = vadd.f32 0.0, %v170
  %v172 = vpop.f32.mrb[0].mxu0
  %173 = vmatprep.mubr.f32.mxu0 0.0
  %174 = vmatmul.mubr.f32.gmra.mrb[0].mxu0 %v66
  %v175 = vpop.f32.mrb[0].mxu0
  %v176 = vadd.f32 0.0, %v175
  %v177 = vpop.f32.mrb[0].mxu0
  %178 = vmatprep.mubr.f32.mxu0 0.0
  %179 = vmatmul.mubr.f32.gmra.mrb[0].mxu0 %v69
  %v180 = vpop.f32.mrb[0].mxu0
  %v181 = vadd.f32 0.0, %v180
  %v182 = vpop.f32.mrb[0].mxu0
  %183 = vmatprep.mubr.f32.mxu0 0.0
  %184 = vmatmul.mubr.f32.gmra.mrb[0].mxu0 %v72
  %v185 = vpop.f32.mrb[0].mxu0
  %v186 = vadd.f32 0.0, %v185
  %v187 = vpop.f32.mrb[0].mxu0
  %188 = vmatprep.mubr.f32.mxu0 0.0
  %189 = vmatmul.mubr.f32.gmra.mrb[0].mxu0 %v75
  %v190 = vpop.f32.mrb[0].mxu0
  %v191 = vadd.f32 0.0, %v190
  %v192 = vpop.f32.mrb[0].mxu0
  %193 = vmatprep.mubr.f32.mxu0 0.0
  %194 = vmatmul.mubr.f32.gmra.mrb[0].mxu0 %v78
  %v195 = vpop.f32.mrb[0].mxu0
  %v196 = vadd.f32 0.0, %v195
  %v197 = vpop.f32.mrb[0].mxu0
  %198 = vmatprep.mubr.f32.mxu0 0.0
  %199 = vmatmul.mubr.f32.gmra.mrb[0].mxu0 %v81
  %v200 = vpop.f32.mrb[0].mxu0
  %v201 = vadd.f32 0.0, %v200
  %v202 = vpop.f32.mrb[0].mxu0
  %203 = vmatprep.mubr.f32.mxu0 0.0
  %204 = vmatmul.mubr.f32.gmra.mrb[0].mxu0 %v84
  %v205 = vpop.f32.mrb[0].mxu0
  %v206 = vadd.f32 0.0, %v205
  %v207 = vpop.f32.mrb[0].mxu0
  %208 = vmatprep.mubr.f32.mxu0 0.0
  %209 = vmatmul.mubr.f32.gmra.mrb[0].mxu0 %v87
  %v210 = vpop.f32.mrb[0].mxu0
  %v211 = vadd.f32 0.0, %v210
  %v212 = vpop.f32.mrb[0].mxu0
  %213 = vdwg.mxu0
  %v215 = vsel %vm52, %v36, 0
  %v218 = vsel %vm52, %v37, 0
  %v221 = vsel %vm52, %v38, 0
  %v224 = vsel %vm52, %v39, 0
  %v227 = vsel %vm52, %v40, 0
  %v230 = vsel %vm52, %v41, 0
  %v233 = vsel %vm52, %v42, 0
  %v236 = vsel %vm52, %v43, 0
  %v239 = vsel %vm52, %v44, 0
  %v242 = vsel %vm52, %v45, 0
  %v245 = vsel %vm52, %v46, 0
  %v248 = vsel %vm52, %v47, 0
  %250 = vmatprep.subr.mxu0 0.0
  %251 = vmatpush1.msra.mxu0 %v22
  %252 = vmatprep.subr.mxu0 0.0
  %253 = vmatpush1.msra.mxu0 %v23
  %254 = vmatprep.subr.mxu0 0.0
  %255 = vmatpush1.msra.mxu0 0.0
  %256 = vmatprep.subr.mxu0 0.0
  %257 = vmatpush1.msra.mxu0 0.0
  %258 = vmatprep.subr.mxu0 0.0
  %259 = vmatpush1.msra.mxu0 0.0
  %260 = vmatprep.subr.mxu0 0.0
  %261 = vmatpush1.msra.mxu0 0.0
  %262 = vmatprep.subr.mxu0 0.0
  %263 = vmatpush1.msra.mxu0 0.0
  %264 = vmatprep.subr.mxu0 0.0
  %265 = vmatpush1.msra.mxu0 0.0
  %266 = vmatprep.subr.mxu0 0.0
  %267 = vmatpush1.msra.mxu0 0.0
  %268 = vmatprep.subr.mxu0 0.0
  %269 = vmatpush1.msra.mxu0 0.0
  %270 = vmatprep.subr.mxu0 0.0
  %271 = vmatpush1.msra.mxu0 0.0
  %272 = vmatprep.subr.mxu0 0.0
  %273 = vmatpush1.msra.mxu0 0.0
  %274 = vmatprep.subr.mxu0 0.0
  %275 = vmatpush1.msra.mxu0 0.0
  %276 = vmatprep.subr.mxu0 0.0
  %277 = vmatpush1.msra.mxu0 0.0
  %278 = vmatprep.subr.mxu0 0.0
  %279 = vmatpush1.msra.mxu0 0.0
  %280 = vmatprep.subr.mxu0 0.0
  %281 = vmatpush1.msra.mxu0 0.0
  %282 = vmatprep.subr.mxu0 0.0
  %283 = vmatpush1.msra.mxu0 0.0
  %284 = vmatprep.subr.mxu0 0.0
  %285 = vmatpush1.msra.mxu0 0.0
  %286 = vmatprep.subr.mxu0 0.0
  %287 = vmatpush1.msra.mxu0 0.0
  %288 = vmatprep.subr.mxu0 0.0
  %289 = vmatpush1.msra.mxu0 0.0
  %290 = vmatprep.subr.mxu0 0.0
  %291 = vmatpush1.msra.mxu0 0.0
  %292 = vmatprep.subr.mxu0 0.0
  %293 = vmatpush1.msra.mxu0 0.0
  %294 = vmatprep.subr.mxu0 0.0
  %295 = vmatpush1.msra.mxu0 0.0
  %296 = vmatprep.subr.mxu0 0.0
  %297 = vmatpush1.msra.mxu0 0.0
  %298 = vmatprep.subr.mxu0 0.0
  %299 = vmatpush1.msra.mxu0 0.0
  %300 = vmatprep.subr.mxu0 0.0
  %301 = vmatpush1.msra.mxu0 0.0
  %302 = vmatprep.subr.mxu0 0.0
  %303 = vmatpush1.msra.mxu0 0.0
  %304 = vmatprep.subr.mxu0 0.0
  %305 = vmatpush1.msra.mxu0 0.0
  %306 = vmatprep.subr.mxu0 0.0
  %307 = vmatpush1.msra.mxu0 0.0
  %308 = vmatprep.subr.mxu0 0.0
  %309 = vmatpush1.msra.mxu0 0.0
  %310 = vmatprep.subr.mxu0 0.0
  %311 = vmatpush1.msra.mxu0 0.0
  %312 = vmatprep.subr.mxu0 0.0
  %313 = vmatpush1.msra.mxu0 0.0
  %314 = vmatprep.mubr.f32.mxu0 0.0
  %315 = vmatmul.mubr.f32.gmra.mrb[0].mxu0 %v215
  %v316 = vpop.f32.mrb[0].mxu0
  %v317 = vadd.f32 0.0, %v316
  %v318 = vpop.f32.mrb[0].mxu0
  %319 = vmatprep.mubr.f32.mxu0 0.0
  %320 = vmatmul.mubr.f32.gmra.mrb[0].mxu0 %v218
  %v321 = vpop.f32.mrb[0].mxu0
  %v322 = vadd.f32 0.0, %v321
  %v323 = vpop.f32.mrb[0].mxu0
  %324 = vmatprep.mubr.f32.mxu0 0.0
  %325 = vmatmul.mubr.f32.gmra.mrb[0].mxu0 %v221
  %v326 = vpop.f32.mrb[0].mxu0
  %v327 = vadd.f32 0.0, %v326
  %v328 = vpop.f32.mrb[0].mxu0
  %329 = vmatprep.mubr.f32.mxu0 0.0
  %330 = vmatmul.mubr.f32.gmra.mrb[0].mxu0 %v224
  %v331 = vpop.f32.mrb[0].mxu0
  %v332 = vadd.f32 0.0, %v331
  %v333 = vpop.f32.mrb[0].mxu0
  %334 = vmatprep.mubr.f32.mxu0 0.0
  %335 = vmatmul.mubr.f32.gmra.mrb[0].mxu0 %v227
  %v336 = vpop.f32.mrb[0].mxu0
  %v337 = vadd.f32 0.0, %v336
  %v338 = vpop.f32.mrb[0].mxu0
  %339 = vmatprep.mubr.f32.mxu0 0.0
  %340 = vmatmul.mubr.f32.gmra.mrb[0].mxu0 %v230
  %v341 = vpop.f32.mrb[0].mxu0
  %v342 = vadd.f32 0.0, %v341
  %v343 = vpop.f32.mrb[0].mxu0
  %344 = vmatprep.mubr.f32.mxu0 0.0
  %345 = vmatmul.mubr.f32.gmra.mrb[0].mxu0 %v233
  %v346 = vpop.f32.mrb[0].mxu0
  %v347 = vadd.f32 0.0, %v346
  %v348 = vpop.f32.mrb[0].mxu0
  %349 = vmatprep.mubr.f32.mxu0 0.0
  %350 = vmatmul.mubr.f32.gmra.mrb[0].mxu0 %v236
  %v351 = vpop.f32.mrb[0].mxu0
  %v352 = vadd.f32 0.0, %v351
  %v353 = vpop.f32.mrb[0].mxu0
  %354 = vmatprep.mubr.f32.mxu0 0.0
  %355 = vmatmul.mubr.f32.gmra.mrb[0].mxu0 %v239
  %v356 = vpop.f32.mrb[0].mxu0
  %v357 = vadd.f32 0.0, %v356
  %v358 = vpop.f32.mrb[0].mxu0
  %359 = vmatprep.mubr.f32.mxu0 0.0
  %360 = vmatmul.mubr.f32.gmra.mrb[0].mxu0 %v242
  %v361 = vpop.f32.mrb[0].mxu0
  %v362 = vadd.f32 0.0, %v361
  %v363 = vpop.f32.mrb[0].mxu0
  %364 = vmatprep.mubr.f32.mxu0 0.0
  %365 = vmatmul.mubr.f32.gmra.mrb[0].mxu0 %v245
  %v366 = vpop.f32.mrb[0].mxu0
  %v367 = vadd.f32 0.0, %v366
  %v368 = vpop.f32.mrb[0].mxu0
  %369 = vmatprep.mubr.f32.mxu0 0.0
  %370 = vmatmul.mubr.f32.gmra.mrb[0].mxu0 %v248
  %v371 = vpop.f32.mrb[0].mxu0
  %v372 = vadd.f32 0.0, %v371
  %v373 = vpop.f32.mrb[0].mxu0
  %374 = vdwg.mxu0
  %376 = vset.pattern.permute.xlu0 0
  %377 = vperm.xlu0 %376, %v48
  %v378 = vpop.permute.xlu0 %377
  %381 = vset.pattern.permute.xlu0 0
  %382 = vperm.xlu0 %381, %v49
  %v383 = vpop.permute.xlu0 %382
  %386 = vset.pattern.permute.xlu0 0
  %387 = vperm.xlu0 %386, %v50
  %v388 = vpop.permute.xlu0 %387
  %391 = vset.pattern.permute.xlu0 0
  %392 = vperm.xlu0 %391, %v51
  %v393 = vpop.permute.xlu0 %392
  %v395 = vadd.f32 %v156, %v378
  %v396 = vadd.f32 %v161, %v383
  %v397 = vadd.f32 %v166, %v388
  %v398 = vadd.f32 %v171, %v393
  %v399 = vadd.f32 %v317, %v378
  %v400 = vadd.f32 %v322, %v383
  %v401 = vadd.f32 %v327, %v388
  %v402 = vadd.f32 %v332, %v393
  %vm403 = vcmask 64512
  %v404 = vsel %vm403, %v395, 0.0
  %v405 = vsel %vm403, %v399, 0.0
  %v406 = vadd.f32 %v404, %v405
  %407 = vadd.xlane.f32.xlu0 %v406
  %v408 = vpop.xlane.xlu0 %407
  %v409 = vsel %vm403, %v396, 0.0
  %v410 = vsel %vm403, %v400, 0.0
  %v411 = vadd.f32 %v409, %v410
  %412 = vadd.xlane.f32.xlu0 %v411
  %v413 = vpop.xlane.xlu0 %412
  %v414 = vsel %vm403, %v397, 0.0
  %v415 = vsel %vm403, %v401, 0.0
  %v416 = vadd.f32 %v414, %v415
  %417 = vadd.xlane.f32.xlu0 %v416
  %v418 = vpop.xlane.xlu0 %417
  %v419 = vsel %vm403, %v398, 0.0
  %v420 = vsel %vm403, %v402, 0.0
  %v421 = vadd.f32 %v419, %v420
  %422 = vadd.xlane.f32.xlu0 %v421
  %v423 = vpop.xlane.xlu0 %422
  %v424 = vmul.f32 %v408, 0.0625
  %v425 = vmul.f32 %v413, 0.0625
  %v426 = vmul.f32 %v418, 0.0625
  %v427 = vmul.f32 %v423, 0.0625
  %v428 = vmul.f32 %v395, %v395
  %v429 = vmul.f32 %v396, %v396
  %v430 = vmul.f32 %v397, %v397
  %v431 = vmul.f32 %v398, %v398
  %v432 = vmul.f32 %v399, %v399
  %v433 = vmul.f32 %v400, %v400
  %v434 = vmul.f32 %v401, %v401
  %v435 = vmul.f32 %v402, %v402
  %v436 = vsel %vm403, %v428, 0.0
  %v437 = vsel %vm403, %v432, 0.0
  %v438 = vadd.f32 %v436, %v437
  %439 = vadd.xlane.f32.xlu0 %v438
  %v440 = vpop.xlane.xlu0 %439
  %v441 = vsel %vm403, %v429, 0.0
  %v442 = vsel %vm403, %v433, 0.0
  %v443 = vadd.f32 %v441, %v442
  %444 = vadd.xlane.f32.xlu0 %v443
  %v445 = vpop.xlane.xlu0 %444
  %v446 = vsel %vm403, %v430, 0.0
  %v447 = vsel %vm403, %v434, 0.0
  %v448 = vadd.f32 %v446, %v447
  %449 = vadd.xlane.f32.xlu0 %v448
  %v450 = vpop.xlane.xlu0 %449
  %v451 = vsel %vm403, %v431, 0.0
  %v452 = vsel %vm403, %v435, 0.0
  %v453 = vadd.f32 %v451, %v452
  %454 = vadd.xlane.f32.xlu0 %v453
  %v455 = vpop.xlane.xlu0 %454
  %v456 = vmul.f32 %v440, 0.0625
  %v457 = vmul.f32 %v445, 0.0625
  %v458 = vmul.f32 %v450, 0.0625
  %v459 = vmul.f32 %v455, 0.0625
  %v460 = vmul.f32 %v424, %v424
  %v461 = vmul.f32 %v425, %v425
  %v462 = vmul.f32 %v426, %v426
  %v463 = vmul.f32 %v427, %v427
  %v464 = vsub.f32 %v456, %v460
  %v465 = vsub.f32 %v457, %v461
  %v466 = vsub.f32 %v458, %v462
  %v467 = vsub.f32 %v459, %v463
  %v468 = vadd.f32 %v464, 1e-05
  %v469 = vadd.f32 %v465, 1e-05
  %v470 = vadd.f32 %v466, 1e-05
  %v471 = vadd.f32 %v467, 1e-05
  %v472 = vrsqrt.pop %v468
  %v473 = vrsqrt.pop %v469
  %v474 = vrsqrt.pop %v470
  %v475 = vrsqrt.pop %v471
  %v476 = vmul.f32 %v48, %v472
  %v477 = vmul.f32 %v49, %v473
  %v478 = vmul.f32 %v50, %v474
  %v479 = vmul.f32 %v51, %v475
  %481 = vset.pattern.permute.xlu0 1
  %482 = vperm.xlu0 %481, %v476
  %v483 = vpop.permute.xlu0 %482
  %486 = vset.pattern.permute.xlu0 1
  %487 = vperm.xlu0 %486, %v477
  %v488 = vpop.permute.xlu0 %487
  %491 = vset.pattern.permute.xlu0 1
  %492 = vperm.xlu0 %491, %v478
  %v493 = vpop.permute.xlu0 %492
  %496 = vset.pattern.permute.xlu0 1
  %497 = vperm.xlu0 %496, %v479
  %v498 = vpop.permute.xlu0 %497
  %v500 = vmul.f32 %v395, %v483
  %v501 = vmul.f32 %v396, %v488
  %v502 = vmul.f32 %v397, %v493
  %v503 = vmul.f32 %v398, %v498
  %v504 = vmul.f32 %v399, %v483
  %v505 = vmul.f32 %v400, %v488
  %v506 = vmul.f32 %v401, %v493
  %v507 = vmul.f32 %v402, %v498
  %v508 = vmul.f32 %v424, %v476
  %v509 = vmul.f32 %v425, %v477
  %v510 = vmul.f32 %v426, %v478
  %v511 = vmul.f32 %v427, %v479
  %516 = vrot.lane.b32.xlu0 %v508, 1
  %v517 = vpop.permute.xlu0 %516
  %518 = vrot.lane.b32.xlu0 %v509, 1
  %v519 = vpop.permute.xlu0 %518
  %520 = vrot.lane.b32.xlu0 %v510, 1
  %v521 = vpop.permute.xlu0 %520
  %522 = vrot.lane.b32.xlu0 %v511, 1
  %v523 = vpop.permute.xlu0 %522
  %v528 = vsub.f32 %v48, %v517
  %v529 = vsub.f32 %v49, %v519
  %v530 = vsub.f32 %v50, %v521
  %v531 = vsub.f32 %v51, %v523
  %533 = vset.pattern.permute.xlu0 2
  %534 = vperm.xlu0 %533, %v528
  %v535 = vpop.permute.xlu0 %534
  %538 = vset.pattern.permute.xlu0 2
  %539 = vperm.xlu0 %538, %v529
  %v540 = vpop.permute.xlu0 %539
  %543 = vset.pattern.permute.xlu0 2
  %544 = vperm.xlu0 %543, %v530
  %v545 = vpop.permute.xlu0 %544
  %548 = vset.pattern.permute.xlu0 2
  %549 = vperm.xlu0 %548, %v531
  %v550 = vpop.permute.xlu0 %549
  %v552 = vadd.f32 %v500, %v535
  %v553 = vadd.f32 %v501, %v540
  %v554 = vadd.f32 %v502, %v545
  %v555 = vadd.f32 %v503, %v550
  %v556 = vadd.f32 %v504, %v535
  %v557 = vadd.f32 %v505, %v540
  %v558 = vadd.f32 %v506, %v545
  %v559 = vadd.f32 %v507, %v550
  %v560 = vmax.f32 %v552, 0.0
  %v561 = vmax.f32 %v553, 0.0
  %v562 = vmax.f32 %v554, 0.0
  %v563 = vmax.f32 %v555, 0.0
  %v564 = vmax.f32 %v556, 0.0
  %v565 = vmax.f32 %v557, 0.0
  %v566 = vmax.f32 %v558, 0.0
  %v567 = vmax.f32 %v559, 0.0
  %568 = vst.msk [vmem:[#allocation2] sm:$0xff] %vm403, %v560
  %569 = vst.msk [vmem:[#allocation2 + $0x8] sm:$0xff] %vm403, %v561
  %570 = vst.msk [vmem:[#allocation2 + $0x10] sm:$0xff] %vm403, %v562
  %571 = vst.msk [vmem:[#allocation2 + $0x18] sm:$0xff] %vm403, %v563
  %572 = vst.msk [vmem:[#allocation2 + $0x60] sm:$0xff] %vm403, %v564
  %573 = vst.msk [vmem:[#allocation2 + $0x68] sm:$0xff] %vm403, %v565
  %574 = vst.msk [vmem:[#allocation2 + $0x70] sm:$0xff] %vm403, %v566
  %575 = vst.msk [vmem:[#allocation2 + $0x78] sm:$0xff] %vm403, %v567
  %v576 = vld [vmem:[%s1] sm:$0xff]
  %v577 = vld [vmem:[%s1 + $0x8] sm:$0xff]
  %v578 = vld [vmem:[%s1 + $0x10] sm:$0xff]
  %v579 = vld [vmem:[%s1 + $0x18] sm:$0xff]
  %580 = vset.pattern.permute.xlu0 3
  %581 = vperm.xlu0 %580, %v48
  %v582 = vpop.permute.xlu0 %581
  %584 = vset.pattern.permute.xlu0 3
  %585 = vperm.xlu0 %584, %v49
  %v586 = vpop.permute.xlu0 %585
  %588 = vset.pattern.permute.xlu0 3
  %589 = vperm.xlu0 %588, %v50
  %v590 = vpop.permute.xlu0 %589
  %592 = vset.pattern.permute.xlu0 3
  %593 = vperm.xlu0 %592, %v51
  %v594 = vpop.permute.xlu0 %593
  %v597 = vsel %vm403, %v176, 0
  %v600 = vsel %vm403, %v181, 0
  %v603 = vsel %vm403, %v186, 0
  %v606 = vsel %vm403, %v191, 0
  %v609 = vsel %vm403, %v576, 0
  %611 = vmatprep.subr.mxu0 0.0
  %612 = vmatpush1.xpose.msra.mxu0 %v609
  %613 = vmatprep.subr.mxu0 0.0
  %614 = vmatpush1.xpose.msra.mxu0 0.0
  %615 = vmatprep.subr.mxu0 0.0
  %616 = vmatpush1.xpose.msra.mxu0 0.0
  %617 = vmatprep.subr.mxu0 0.0
  %618 = vmatpush1.xpose.msra.mxu0 0.0
  %619 = vmatprep.subr.mxu0 0.0
  %620 = vmatpush1.xpose.msra.mxu0 0.0
  %621 = vmatprep.subr.mxu0 0.0
  %622 = vmatpush1.xpose.msra.mxu0 0.0
  %623 = vmatprep.subr.mxu0 0.0
  %624 = vmatpush1.xpose.msra.mxu0 0.0
  %625 = vmatprep.subr.mxu0 0.0
  %626 = vmatpush1.xpose.msra.mxu0 0.0
  %627 = vmatprep.subr.mxu0 0.0
  %628 = vmatpush1.xpose.msra.mxu0 0.0
  %629 = vmatprep.subr.mxu0 0.0
  %630 = vmatpush1.xpose.msra.mxu0 0.0
  %631 = vmatprep.subr.mxu0 0.0
  %632 = vmatpush1.xpose.msra.mxu0 0.0
  %633 = vmatprep.subr.mxu0 0.0
  %634 = vmatpush1.xpose.msra.mxu0 0.0
  %635 = vmatprep.subr.mxu0 0.0
  %636 = vmatpush1.xpose.msra.mxu0 0.0
  %637 = vmatprep.subr.mxu0 0.0
  %638 = vmatpush1.xpose.msra.mxu0 0.0
  %639 = vmatprep.subr.mxu0 0.0
  %640 = vmatpush1.xpose.msra.mxu0 0.0
  %641 = vmatprep.subr.mxu0 0.0
  %642 = vmatpush1.xpose.msra.mxu0 0.0
  %643 = vmatprep.subr.mxu0 0.0
  %644 = vmatpush1.xpose.msra.mxu0 0.0
  %645 = vmatprep.subr.mxu0 0.0
  %646 = vmatpush1.xpose.msra.mxu0 0.0
  %647 = vmatprep.subr.mxu0 0.0
  %648 = vmatpush1.xpose.msra.mxu0 0.0
  %649 = vmatprep.subr.mxu0 0.0
  %650 = vmatpush1.xpose.msra.mxu0 0.0
  %651 = vmatprep.subr.mxu0 0.0
  %652 = vmatpush1.xpose.msra.mxu0 0.0
  %653 = vmatprep.subr.mxu0 0.0
  %654 = vmatpush1.xpose.msra.mxu0 0.0
  %655 = vmatprep.subr.mxu0 0.0
  %656 = vmatpush1.xpose.msra.mxu0 0.0
  %657 = vmatprep.subr.mxu0 0.0
  %658 = vmatpush1.xpose.msra.mxu0 0.0
  %659 = vmatprep.subr.mxu0 0.0
  %660 = vmatpush1.xpose.msra.mxu0 0.0
  %661 = vmatprep.subr.mxu0 0.0
  %662 = vmatpush1.xpose.msra.mxu0 0.0
  %663 = vmatprep.subr.mxu0 0.0
  %664 = vmatpush1.xpose.msra.mxu0 0.0
  %665 = vmatprep.subr.mxu0 0.0
  %666 = vmatpush1.xpose.msra.mxu0 0.0
  %667 = vmatprep.subr.mxu0 0.0
  %668 = vmatpush1.xpose.msra.mxu0 0.0
  %669 = vmatprep.subr.mxu0 0.0
  %670 = vmatpush1.xpose.msra.mxu0 0.0
  %671 = vmatprep.subr.mxu0 0.0
  %672 = vmatpush1.xpose.msra.mxu0 0.0
  %673 = vmatprep.subr.mxu0 0.0
  %674 = vmatpush1.xpose.msra.mxu0 0.0
  %675 = vmatprep.mubr.f32.mxu0 0.0
  %676 = vmatmul.mubr.f32.gmra.mrb[0].mxu0 %v597
  %v677 = vpop.f32.mrb[0].mxu0
  %v678 = vadd.f32 %v582, %v677
  %v679 = vpop.f32.mrb[0].mxu0
  %680 = vmatprep.mubr.f32.mxu0 0.0
  %681 = vmatmul.mubr.f32.gmra.mrb[0].mxu0 %v600
  %v682 = vpop.f32.mrb[0].mxu0
  %v683 = vadd.f32 %v586, %v682
  %v684 = vpop.f32.mrb[0].mxu0
  %685 = vmatprep.mubr.f32.mxu0 0.0
  %686 = vmatmul.mubr.f32.gmra.mrb[0].mxu0 %v603
  %v687 = vpop.f32.mrb[0].mxu0
  %v688 = vadd.f32 %v590, %v687
  %v689 = vpop.f32.mrb[0].mxu0
  %690 = vmatprep.mubr.f32.mxu0 0.0
  %691 = vmatmul.mubr.f32.gmra.mrb[0].mxu0 %v606
  %v692 = vpop.f32.mrb[0].mxu0
  %v693 = vadd.f32 %v594, %v692
  %v694 = vpop.f32.mrb[0].mxu0
  %695 = vdwg.mxu0
  %v697 = vsel %vm403, %v337, 0
  %v700 = vsel %vm403, %v342, 0
  %v703 = vsel %vm403, %v347, 0
  %v706 = vsel %vm403, %v352, 0
  %v709 = vsel %vm403, %v577, 0
  %711 = vmatprep.subr.mxu0 0.0
  %712 = vmatpush1.xpose.msra.mxu0 %v709
  %713 = vmatprep.subr.mxu0 0.0
  %714 = vmatpush1.xpose.msra.mxu0 0.0
  %715 = vmatprep.subr.mxu0 0.0
  %716 = vmatpush1.xpose.msra.mxu0 0.0
  %717 = vmatprep.subr.mxu0 0.0
  %718 = vmatpush1.xpose.msra.mxu0 0.0
  %719 = vmatprep.subr.mxu0 0.0
  %720 = vmatpush1.xpose.msra.mxu0 0.0
  %721 = vmatprep.subr.mxu0 0.0
  %722 = vmatpush1.xpose.msra.mxu0 0.0
  %723 = vmatprep.subr.mxu0 0.0
  %724 = vmatpush1.xpose.msra.mxu0 0.0
  %725 = vmatprep.subr.mxu0 0.0
  %726 = vmatpush1.xpose.msra.mxu0 0.0
  %727 = vmatprep.subr.mxu0 0.0
  %728 = vmatpush1.xpose.msra.mxu0 0.0
  %729 = vmatprep.subr.mxu0 0.0
  %730 = vmatpush1.xpose.msra.mxu0 0.0
  %731 = vmatprep.subr.mxu0 0.0
  %732 = vmatpush1.xpose.msra.mxu0 0.0
  %733 = vmatprep.subr.mxu0 0.0
  %734 = vmatpush1.xpose.msra.mxu0 0.0
  %735 = vmatprep.subr.mxu0 0.0
  %736 = vmatpush1.xpose.msra.mxu0 0.0
  %737 = vmatprep.subr.mxu0 0.0
  %738 = vmatpush1.xpose.msra.mxu0 0.0
  %739 = vmatprep.subr.mxu0 0.0
  %740 = vmatpush1.xpose.msra.mxu0 0.0
  %741 = vmatprep.subr.mxu0 0.0
  %742 = vmatpush1.xpose.msra.mxu0 0.0
  %743 = vmatprep.subr.mxu0 0.0
  %744 = vmatpush1.xpose.msra.mxu0 0.0
  %745 = vmatprep.subr.mxu0 0.0
  %746 = vmatpush1.xpose.msra.mxu0 0.0
  %747 = vmatprep.subr.mxu0 0.0
  %748 = vmatpush1.xpose.msra.mxu0 0.0
  %749 = vmatprep.subr.mxu0 0.0
  %750 = vmatpush1.xpose.msra.mxu0 0.0
  %751 = vmatprep.subr.mxu0 0.0
  %752 = vmatpush1.xpose.msra.mxu0 0.0
  %753 = vmatprep.subr.mxu0 0.0
  %754 = vmatpush1.xpose.msra.mxu0 0.0
  %755 = vmatprep.subr.mxu0 0.0
  %756 = vmatpush1.xpose.msra.mxu0 0.0
  %757 = vmatprep.subr.mxu0 0.0
  %758 = vmatpush1.xpose.msra.mxu0 0.0
  %759 = vmatprep.subr.mxu0 0.0
  %760 = vmatpush1.xpose.msra.mxu0 0.0
  %761 = vmatprep.subr.mxu0 0.0
  %762 = vmatpush1.xpose.msra.mxu0 0.0
  %763 = vmatprep.subr.mxu0 0.0
  %764 = vmatpush1.xpose.msra.mxu0 0.0
  %765 = vmatprep.subr.mxu0 0.0
  %766 = vmatpush1.xpose.msra.mxu0 0.0
  %767 = vmatprep.subr.mxu0 0.0
  %768 = vmatpush1.xpose.msra.mxu0 0.0
  %769 = vmatprep.subr.mxu0 0.0
  %770 = vmatpush1.xpose.msra.mxu0 0.0
  %771 = vmatprep.subr.mxu0 0.0
  %772 = vmatpush1.xpose.msra.mxu0 0.0
  %773 = vmatprep.subr.mxu0 0.0
  %774 = vmatpush1.xpose.msra.mxu0 0.0
  %775 = vmatprep.mubr.f32.mxu0 0.0
  %776 = vmatmul.mubr.f32.gmra.mrb[0].mxu0 %v697
  %v777 = vpop.f32.mrb[0].mxu0
  %v778 = vadd.f32 %v582, %v777
  %v779 = vpop.f32.mrb[0].mxu0
  %780 = vmatprep.mubr.f32.mxu0 0.0
  %781 = vmatmul.mubr.f32.gmra.mrb[0].mxu0 %v700
  %v782 = vpop.f32.mrb[0].mxu0
  %v783 = vadd.f32 %v586, %v782
  %v784 = vpop.f32.mrb[0].mxu0
  %785 = vmatprep.mubr.f32.mxu0 0.0
  %786 = vmatmul.mubr.f32.gmra.mrb[0].mxu0 %v703
  %v787 = vpop.f32.mrb[0].mxu0
  %v788 = vadd.f32 %v590, %v787
  %v789 = vpop.f32.mrb[0].mxu0
  %790 = vmatprep.mubr.f32.mxu0 0.0
  %791 = vmatmul.mubr.f32.gmra.mrb[0].mxu0 %v706
  %v792 = vpop.f32.mrb[0].mxu0
  %v793 = vadd.f32 %v594, %v792
  %v794 = vpop.f32.mrb[0].mxu0
  %795 = vdwg.mxu0
  %v797 = vsel %vm403, %v196, 0
  %v800 = vsel %vm403, %v201, 0
  %v803 = vsel %vm403, %v206, 0
  %v806 = vsel %vm403, %v211, 0
  %v809 = vsel %vm403, %v578, 0
  %811 = vmatprep.subr.mxu0 0.0
  %812 = vmatpush1.xpose.msra.mxu0 %v809
  %813 = vmatprep.subr.mxu0 0.0
  %814 = vmatpush1.xpose.msra.mxu0 0.0
  %815 = vmatprep.subr.mxu0 0.0
  %816 = vmatpush1.xpose.msra.mxu0 0.0
  %817 = vmatprep.subr.mxu0 0.0
  %818 = vmatpush1.xpose.msra.mxu0 0.0
  %819 = vmatprep.subr.mxu0 0.0
  %820 = vmatpush1.xpose.msra.mxu0 0.0
  %821 = vmatprep.subr.mxu0 0.0
  %822 = vmatpush1.xpose.msra.mxu0 0.0
  %823 = vmatprep.subr.mxu0 0.0
  %824 = vmatpush1.xpose.msra.mxu0 0.0
  %825 = vmatprep.subr.mxu0 0.0
  %826 = vmatpush1.xpose.msra.mxu0 0.0
  %827 = vmatprep.subr.mxu0 0.0
  %828 = vmatpush1.xpose.msra.mxu0 0.0
  %829 = vmatprep.subr.mxu0 0.0
  %830 = vmatpush1.xpose.msra.mxu0 0.0
  %831 = vmatprep.subr.mxu0 0.0
  %832 = vmatpush1.xpose.msra.mxu0 0.0
  %833 = vmatprep.subr.mxu0 0.0
  %834 = vmatpush1.xpose.msra.mxu0 0.0
  %835 = vmatprep.subr.mxu0 0.0
  %836 = vmatpush1.xpose.msra.mxu0 0.0
  %837 = vmatprep.subr.mxu0 0.0
  %838 = vmatpush1.xpose.msra.mxu0 0.0
  %839 = vmatprep.subr.mxu0 0.0
  %840 = vmatpush1.xpose.msra.mxu0 0.0
  %841 = vmatprep.subr.mxu0 0.0
  %842 = vmatpush1.xpose.msra.mxu0 0.0
  %843 = vmatprep.subr.mxu0 0.0
  %844 = vmatpush1.xpose.msra.mxu0 0.0
  %845 = vmatprep.subr.mxu0 0.0
  %846 = vmatpush1.xpose.msra.mxu0 0.0
  %847 = vmatprep.subr.mxu0 0.0
  %848 = vmatpush1.xpose.msra.mxu0 0.0
  %849 = vmatprep.subr.mxu0 0.0
  %850 = vmatpush1.xpose.msra.mxu0 0.0
  %851 = vmatprep.subr.mxu0 0.0
  %852 = vmatpush1.xpose.msra.mxu0 0.0
  %853 = vmatprep.subr.mxu0 0.0
  %854 = vmatpush1.xpose.msra.mxu0 0.0
  %855 = vmatprep.subr.mxu0 0.0
  %856 = vmatpush1.xpose.msra.mxu0 0.0
  %857 = vmatprep.subr.mxu0 0.0
  %858 = vmatpush1.xpose.msra.mxu0 0.0
  %859 = vmatprep.subr.mxu0 0.0
  %860 = vmatpush1.xpose.msra.mxu0 0.0
  %861 = vmatprep.subr.mxu0 0.0
  %862 = vmatpush1.xpose.msra.mxu0 0.0
  %863 = vmatprep.subr.mxu0 0.0
  %864 = vmatpush1.xpose.msra.mxu0 0.0
  %865 = vmatprep.subr.mxu0 0.0
  %866 = vmatpush1.xpose.msra.mxu0 0.0
  %867 = vmatprep.subr.mxu0 0.0
  %868 = vmatpush1.xpose.msra.mxu0 0.0
  %869 = vmatprep.subr.mxu0 0.0
  %870 = vmatpush1.xpose.msra.mxu0 0.0
  %871 = vmatprep.subr.mxu0 0.0
  %872 = vmatpush1.xpose.msra.mxu0 0.0
  %873 = vmatprep.subr.mxu0 0.0
  %874 = vmatpush1.xpose.msra.mxu0 0.0
  %875 = vmatprep.mubr.f32.mxu0 0.0
  %876 = vmatmul.mubr.f32.gmra.mrb[0].mxu0 %v797
  %v877 = vpop.f32.mrb[0].mxu0
  %v878 = vadd.f32 %v582, %v877
  %v879 = vpop.f32.mrb[0].mxu0
  %880 = vmatprep.mubr.f32.mxu0 0.0
  %881 = vmatmul.mubr.f32.gmra.mrb[0].mxu0 %v800
  %v882 = vpop.f32.mrb[0].mxu0
  %v883 = vadd.f32 %v586, %v882
  %v884 = vpop.f32.mrb[0].mxu0
  %885 = vmatprep.mubr.f32.mxu0 0.0
  %886 = vmatmul.mubr.f32.gmra.mrb[0].mxu0 %v803
  %v887 = vpop.f32.mrb[0].mxu0
  %v888 = vadd.f32 %v590, %v887
  %v889 = vpop.f32.mrb[0].mxu0
  %890 = vmatprep.mubr.f32.mxu0 0.0
  %891 = vmatmul.mubr.f32.gmra.mrb[0].mxu0 %v806
  %v892 = vpop.f32.mrb[0].mxu0
  %v893 = vadd.f32 %v594, %v892
  %v894 = vpop.f32.mrb[0].mxu0
  %895 = vdwg.mxu0
  %v897 = vsel %vm403, %v357, 0
  %v900 = vsel %vm403, %v362, 0
  %v903 = vsel %vm403, %v367, 0
  %v906 = vsel %vm403, %v372, 0
  %v909 = vsel %vm403, %v579, 0
  %911 = vmatprep.subr.mxu0 0.0
  %912 = vmatpush1.xpose.msra.mxu0 %v909
  %913 = vmatprep.subr.mxu0 0.0
  %914 = vmatpush1.xpose.msra.mxu0 0.0
  %915 = vmatprep.subr.mxu0 0.0
  %916 = vmatpush1.xpose.msra.mxu0 0.0
  %917 = vmatprep.subr.mxu0 0.0
  %918 = vmatpush1.xpose.msra.mxu0 0.0
  %919 = vmatprep.subr.mxu0 0.0
  %920 = vmatpush1.xpose.msra.mxu0 0.0
  %921 = vmatprep.subr.mxu0 0.0
  %922 = vmatpush1.xpose.msra.mxu0 0.0
  %923 = vmatprep.subr.mxu0 0.0
  %924 = vmatpush1.xpose.msra.mxu0 0.0
  %925 = vmatprep.subr.mxu0 0.0
  %926 = vmatpush1.xpose.msra.mxu0 0.0
  %927 = vmatprep.subr.mxu0 0.0
  %928 = vmatpush1.xpose.msra.mxu0 0.0
  %929 = vmatprep.subr.mxu0 0.0
  %930 = vmatpush1.xpose.msra.mxu0 0.0
  %931 = vmatprep.subr.mxu0 0.0
  %932 = vmatpush1.xpose.msra.mxu0 0.0
  %933 = vmatprep.subr.mxu0 0.0
  %934 = vmatpush1.xpose.msra.mxu0 0.0
  %935 = vmatprep.subr.mxu0 0.0
  %936 = vmatpush1.xpose.msra.mxu0 0.0
  %937 = vmatprep.subr.mxu0 0.0
  %938 = vmatpush1.xpose.msra.mxu0 0.0
  %939 = vmatprep.subr.mxu0 0.0
  %940 = vmatpush1.xpose.msra.mxu0 0.0
  %941 = vmatprep.subr.mxu0 0.0
  %942 = vmatpush1.xpose.msra.mxu0 0.0
  %943 = vmatprep.subr.mxu0 0.0
  %944 = vmatpush1.xpose.msra.mxu0 0.0
  %945 = vmatprep.subr.mxu0 0.0
  %946 = vmatpush1.xpose.msra.mxu0 0.0
  %947 = vmatprep.subr.mxu0 0.0
  %948 = vmatpush1.xpose.msra.mxu0 0.0
  %949 = vmatprep.subr.mxu0 0.0
  %950 = vmatpush1.xpose.msra.mxu0 0.0
  %951 = vmatprep.subr.mxu0 0.0
  %952 = vmatpush1.xpose.msra.mxu0 0.0
  %953 = vmatprep.subr.mxu0 0.0
  %954 = vmatpush1.xpose.msra.mxu0 0.0
  %955 = vmatprep.subr.mxu0 0.0
  %956 = vmatpush1.xpose.msra.mxu0 0.0
  %957 = vmatprep.subr.mxu0 0.0
  %958 = vmatpush1.xpose.msra.mxu0 0.0
  %959 = vmatprep.subr.mxu0 0.0
  %960 = vmatpush1.xpose.msra.mxu0 0.0
  %961 = vmatprep.subr.mxu0 0.0
  %962 = vmatpush1.xpose.msra.mxu0 0.0
  %963 = vmatprep.subr.mxu0 0.0
  %964 = vmatpush1.xpose.msra.mxu0 0.0
  %965 = vmatprep.subr.mxu0 0.0
  %966 = vmatpush1.xpose.msra.mxu0 0.0
  %967 = vmatprep.subr.mxu0 0.0
  %968 = vmatpush1.xpose.msra.mxu0 0.0
  %969 = vmatprep.subr.mxu0 0.0
  %970 = vmatpush1.xpose.msra.mxu0 0.0
  %971 = vmatprep.subr.mxu0 0.0
  %972 = vmatpush1.xpose.msra.mxu0 0.0
  %973 = vmatprep.subr.mxu0 0.0
  %974 = vmatpush1.xpose.msra.mxu0 0.0
  %975 = vmatprep.mubr.f32.mxu0 0.0
  %976 = vmatmul.mubr.f32.gmra.mrb[0].mxu0 %v897
  %v977 = vpop.f32.mrb[0].mxu0
  %v978 = vadd.f32 %v582, %v977
  %v979 = vpop.f32.mrb[0].mxu0
  %980 = vmatprep.mubr.f32.mxu0 0.0
  %981 = vmatmul.mubr.f32.gmra.mrb[0].mxu0 %v900
  %v982 = vpop.f32.mrb[0].mxu0
  %v983 = vadd.f32 %v586, %v982
  %v984 = vpop.f32.mrb[0].mxu0
  %985 = vmatprep.mubr.f32.mxu0 0.0
  %986 = vmatmul.mubr.f32.gmra.mrb[0].mxu0 %v903
  %v987 = vpop.f32.mrb[0].mxu0
  %v988 = vadd.f32 %v590, %v987
  %v989 = vpop.f32.mrb[0].mxu0
  %990 = vmatprep.mubr.f32.mxu0 0.0
  %991 = vmatmul.mubr.f32.gmra.mrb[0].mxu0 %v906
  %v992 = vpop.f32.mrb[0].mxu0
  %v993 = vadd.f32 %v594, %v992
  %v994 = vpop.f32.mrb[0].mxu0
  %995 = vdwg.mxu0
  %v996 = vmax.f32 %v678, 0.0
  %v997 = vmax.f32 %v683, 0.0
  %v998 = vmax.f32 %v688, 0.0
  %v999 = vmax.f32 %v693, 0.0
  %v1000 = vmax.f32 %v778, 0.0
  %v1001 = vmax.f32 %v783, 0.0
  %v1002 = vmax.f32 %v788, 0.0
  %v1003 = vmax.f32 %v793, 0.0
  %v1004 = vmax.f32 %v878, 0.0
  %v1005 = vmax.f32 %v883, 0.0
  %v1006 = vmax.f32 %v888, 0.0
  %v1007 = vmax.f32 %v893, 0.0
  %v1008 = vmax.f32 %v978, 0.0
  %v1009 = vmax.f32 %v983, 0.0
  %v1010 = vmax.f32 %v988, 0.0
  %v1011 = vmax.f32 %v993, 0.0
  %1012 = vst.msk [vmem:[#allocation2 + $0x20] sm:$0xff] %vm403, %v996
  %1013 = vst.msk [vmem:[#allocation2 + $0x28] sm:$0xff] %vm403, %v997
  %1014 = vst.msk [vmem:[#allocation2 + $0x30] sm:$0xff] %vm403, %v998
  %1015 = vst.msk [vmem:[#allocation2 + $0x38] sm:$0xff] %vm403, %v999
  %1016 = vst.msk [vmem:[#allocation2 + $0x80] sm:$0xff] %vm403, %v1000
  %1017 = vst.msk [vmem:[#allocation2 + $0x88] sm:$0xff] %vm403, %v1001
  %1018 = vst.msk [vmem:[#allocation2 + $0x90] sm:$0xff] %vm403, %v1002
  %1019 = vst.msk [vmem:[#allocation2 + $0x98] sm:$0xff] %vm403, %v1003
  %1020 = vst.msk [vmem:[#allocation2 + $0x40] sm:$0xff] %vm403, %v1004
  %1021 = vst.msk [vmem:[#allocation2 + $0x48] sm:$0xff] %vm403, %v1005
  %1022 = vst.msk [vmem:[#allocation2 + $0x50] sm:$0xff] %vm403, %v1006
  %1023 = vst.msk [vmem:[#allocation2 + $0x58] sm:$0xff] %vm403, %v1007
  %1024 = vst.msk [vmem:[#allocation2 + $0xa0] sm:$0xff] %vm403, %v1008
  %1025 = vst.msk [vmem:[#allocation2 + $0xa8] sm:$0xff] %vm403, %v1009
  %1026 = vst.msk [vmem:[#allocation2 + $0xb0] sm:$0xff] %vm403, %v1010
  %1027 = vst.msk [vmem:[#allocation2 + $0xb8] sm:$0xff] %vm403, %v1011
  %v1028 = vld [vmem:[%s3] sm:$0xff]
  %v1029 = vld [vmem:[%s3 + $0x8] sm:$0xff]
  %v1030 = vld [vmem:[%s3 + $0x10] sm:$0xff]
  %v1031 = vld [vmem:[%s3 + $0x18] sm:$0xff]
  %v1032 = vld [vmem:[#allocation2] sm:$0xff]
  %v1033 = vld [vmem:[#allocation2 + $0x8] sm:$0xff]
  %v1034 = vld [vmem:[#allocation2 + $0x10] sm:$0xff]
  %v1035 = vld [vmem:[#allocation2 + $0x18] sm:$0xff]
  %v1036 = vld [vmem:[#allocation2 + $0x20] sm:$0xff]
  %v1037 = vld [vmem:[#allocation2 + $0x28] sm:$0xff]
  %v1038 = vld [vmem:[#allocation2 + $0x30] sm:$0xff]
  %v1039 = vld [vmem:[#allocation2 + $0x38] sm:$0xff]
  %v1040 = vld [vmem:[#allocation2 + $0x40] sm:$0xff]
  %v1041 = vld [vmem:[#allocation2 + $0x48] sm:$0xff]
  %v1042 = vld [vmem:[#allocation2 + $0x50] sm:$0xff]
  %v1043 = vld [vmem:[#allocation2 + $0x58] sm:$0xff]
  %v1044 = vld [vmem:[#allocation2 + $0x60] sm:$0xff]
  %v1045 = vld [vmem:[#allocation2 + $0x68] sm:$0xff]
  %v1046 = vld [vmem:[#allocation2 + $0x70] sm:$0xff]
  %v1047 = vld [vmem:[#allocation2 + $0x78] sm:$0xff]
  %v1048 = vld [vmem:[#allocation2 + $0x80] sm:$0xff]
  %v1049 = vld [vmem:[#allocation2 + $0x88] sm:$0xff]
  %v1050 = vld [vmem:[#allocation2 + $0x90] sm:$0xff]
  %v1051 = vld [vmem:[#allocation2 + $0x98] sm:$0xff]
  %v1052 = vld [vmem:[#allocation2 + $0xa0] sm:$0xff]
  %v1053 = vld [vmem:[#allocation2 + $0xa8] sm:$0xff]
  %v1054 = vld [vmem:[#allocation2 + $0xb0] sm:$0xff]
  %v1055 = vld [vmem:[#allocation2 + $0xb8] sm:$0xff]
  %vm1056 = vcmask 785408
  %v1058 = vsel %vm1056, %v1028, 0
  %v1061 = vsel %vm1056, %v1029, 0
  %1063 = vmatprep.subr.mxu0 0.0
  %1064 = vmatpush1.msra.mxu0 %v1032
  %1065 = vmatprep.subr.mxu0 0.0
  %1066 = vmatpush1.msra.mxu0 %v1033
  %1067 = vmatprep.subr.mxu0 0.0
  %1068 = vmatpush1.msra.mxu0 %v1034
  %1069 = vmatprep.subr.mxu0 0.0
  %1070 = vmatpush1.msra.mxu0 %v1035
  %1071 = vmatprep.subr.mxu0 0.0
  %1072 = vmatpush1.msra.mxu0 %v1036
  %1073 = vmatprep.subr.mxu0 0.0
  %1074 = vmatpush1.msra.mxu0 %v1037
  %1075 = vmatprep.subr.mxu0 0.0
  %1076 = vmatpush1.msra.mxu0 %v1038
  %1077 = vmatprep.subr.mxu0 0.0
  %1078 = vmatpush1.msra.mxu0 %v1039
  %1079 = vmatprep.subr.mxu0 0.0
  %1080 = vmatpush1.msra.mxu0 %v1040
  %1081 = vmatprep.subr.mxu0 0.0
  %1082 = vmatpush1.msra.mxu0 %v1041
  %1083 = vmatprep.subr.mxu0 0.0
  %1084 = vmatpush1.msra.mxu0 %v1042
  %1085 = vmatprep.subr.mxu0 0.0
  %1086 = vmatpush1.msra.mxu0 %v1043
  %1087 = vmatprep.subr.mxu0 0.0
  %1088 = vmatpush1.msra.mxu0 0.0
  %1089 = vmatprep.subr.mxu0 0.0
  %1090 = vmatpush1.msra.mxu0 0.0
  %1091 = vmatprep.subr.mxu0 0.0
  %1092 = vmatpush1.msra.mxu0 0.0
  %1093 = vmatprep.subr.mxu0 0.0
  %1094 = vmatpush1.msra.mxu0 0.0
  %1095 = vmatprep.subr.mxu0 0.0
  %1096 = vmatpush1.msra.mxu0 0.0
  %1097 = vmatprep.subr.mxu0 0.0
  %1098 = vmatpush1.msra.mxu0 0.0
  %1099 = vmatprep.subr.mxu0 0.0
  %1100 = vmatpush1.msra.mxu0 0.0
  %1101 = vmatprep.subr.mxu0 0.0
  %1102 = vmatpush1.msra.mxu0 0.0
  %1103 = vmatprep.subr.mxu0 0.0
  %1104 = vmatpush1.msra.mxu0 0.0
  %1105 = vmatprep.subr.mxu0 0.0
  %1106 = vmatpush1.msra.mxu0 0.0
  %1107 = vmatprep.subr.mxu0 0.0
  %1108 = vmatpush1.msra.mxu0 0.0
  %1109 = vmatprep.subr.mxu0 0.0
  %1110 = vmatpush1.msra.mxu0 0.0
  %1111 = vmatprep.subr.mxu0 0.0
  %1112 = vmatpush1.msra.mxu0 0.0
  %1113 = vmatprep.subr.mxu0 0.0
  %1114 = vmatpush1.msra.mxu0 0.0
  %1115 = vmatprep.subr.mxu0 0.0
  %1116 = vmatpush1.msra.mxu0 0.0
  %1117 = vmatprep.subr.mxu0 0.0
  %1118 = vmatpush1.msra.mxu0 0.0
  %1119 = vmatprep.subr.mxu0 0.0
  %1120 = vmatpush1.msra.mxu0 0.0
  %1121 = vmatprep.subr.mxu0 0.0
  %1122 = vmatpush1.msra.mxu0 0.0
  %1123 = vmatprep.subr.mxu0 0.0
  %1124 = vmatpush1.msra.mxu0 0.0
  %1125 = vmatprep.subr.mxu0 0.0
  %1126 = vmatpush1.msra.mxu0 0.0
  %1127 = vmatprep.mubr.f32.mxu0 0.0
  %1128 = vmatmul.mubr.f32.gmra.mrb[0].mxu0 %v1058
  %v1129 = vpop.f32.mrb[0].mxu0
  %v1130 = vadd.f32 0.0, %v1129
  %v1131 = vpop.f32.mrb[0].mxu0
  %1132 = vmatprep.mubr.f32.mxu0 0.0
  %1133 = vmatmul.mubr.f32.gmra.mrb[0].mxu0 %v1061
  %v1134 = vpop.f32.mrb[0].mxu0
  %v1135 = vadd.f32 0.0, %v1134
  %v1136 = vpop.f32.mrb[0].mxu0
  %1137 = vdwg.mxu0
  %v1139 = vsel %vm1056, %v1030, 0
  %v1142 = vsel %vm1056, %v1031, 0
  %1144 = vmatprep.subr.mxu0 0.0
  %1145 = vmatpush1.msra.mxu0 %v1044
  %1146 = vmatprep.subr.mxu0 0.0
  %1147 = vmatpush1.msra.mxu0 %v1045
  %1148 = vmatprep.subr.mxu0 0.0
  %1149 = vmatpush1.msra.mxu0 %v1046
  %1150 = vmatprep.subr.mxu0 0.0
  %1151 = vmatpush1.msra.mxu0 %v1047
  %1152 = vmatprep.subr.mxu0 0.0
  %1153 = vmatpush1.msra.mxu0 %v1048
  %1154 = vmatprep.subr.mxu0 0.0
  %1155 = vmatpush1.msra.mxu0 %v1049
  %1156 = vmatprep.subr.mxu0 0.0
  %1157 = vmatpush1.msra.mxu0 %v1050
  %1158 = vmatprep.subr.mxu0 0.0
  %1159 = vmatpush1.msra.mxu0 %v1051
  %1160 = vmatprep.subr.mxu0 0.0
  %1161 = vmatpush1.msra.mxu0 %v1052
  %1162 = vmatprep.subr.mxu0 0.0
  %1163 = vmatpush1.msra.mxu0 %v1053
  %1164 = vmatprep.subr.mxu0 0.0
  %1165 = vmatpush1.msra.mxu0 %v1054
  %1166 = vmatprep.subr.mxu0 0.0
  %1167 = vmatpush1.msra.mxu0 %v1055
  %1168 = vmatprep.subr.mxu0 0.0
  %1169 = vmatpush1.msra.mxu0 0.0
  %1170 = vmatprep.subr.mxu0 0.0
  %1171 = vmatpush1.msra.mxu0 0.0
  %1172 = vmatprep.subr.mxu0 0.0
  %1173 = vmatpush1.msra.mxu0 0.0
  %1174 = vmatprep.subr.mxu0 0.0
  %1175 = vmatpush1.msra.mxu0 0.0
  %1176 = vmatprep.subr.mxu0 0.0
  %1177 = vmatpush1.msra.mxu0 0.0
  %1178 = vmatprep.subr.mxu0 0.0
  %1179 = vmatpush1.msra.mxu0 0.0
  %1180 = vmatprep.subr.mxu0 0.0
  %1181 = vmatpush1.msra.mxu0 0.0
  %1182 = vmatprep.subr.mxu0 0.0
  %1183 = vmatpush1.msra.mxu0 0.0
  %1184 = vmatprep.subr.mxu0 0.0
  %1185 = vmatpush1.msra.mxu0 0.0
  %1186 = vmatprep.subr.mxu0 0.0
  %1187 = vmatpush1.msra.mxu0 0.0
  %1188 = vmatprep.subr.mxu0 0.0
  %1189 = vmatpush1.msra.mxu0 0.0
  %1190 = vmatprep.subr.mxu0 0.0
  %1191 = vmatpush1.msra.mxu0 0.0
  %1192 = vmatprep.subr.mxu0 0.0
  %1193 = vmatpush1.msra.mxu0 0.0
  %1194 = vmatprep.subr.mxu0 0.0
  %1195 = vmatpush1.msra.mxu0 0.0
  %1196 = vmatprep.subr.mxu0 0.0
  %1197 = vmatpush1.msra.mxu0 0.0
  %1198 = vmatprep.subr.mxu0 0.0
  %1199 = vmatpush1.msra.mxu0 0.0
  %1200 = vmatprep.subr.mxu0 0.0
  %1201 = vmatpush1.msra.mxu0 0.0
  %1202 = vmatprep.subr.mxu0 0.0
  %1203 = vmatpush1.msra.mxu0 0.0
  %1204 = vmatprep.subr.mxu0 0.0
  %1205 = vmatpush1.msra.mxu0 0.0
  %1206 = vmatprep.subr.mxu0 0.0
  %1207 = vmatpush1.msra.mxu0 0.0
  %1208 = vmatprep.mubr.f32.mxu0 0.0
  %1209 = vmatmul.mubr.f32.gmra.mrb[0].mxu0 %v1139
  %v1210 = vpop.f32.mrb[0].mxu0
  %v1211 = vadd.f32 0.0, %v1210
  %v1212 = vpop.f32.mrb[0].mxu0
  %1213 = vmatprep.mubr.f32.mxu0 0.0
  %1214 = vmatmul.mubr.f32.gmra.mrb[0].mxu0 %v1142
  %v1215 = vpop.f32.mrb[0].mxu0
  %v1216 = vadd.f32 0.0, %v1215
  %v1217 = vpop.f32.mrb[0].mxu0
  %1218 = vdwg.mxu0
  %v1219 = vsel %vm403, %v1130, 0.0
  %v1220 = vsel %vm403, %v1211, 0.0
  %v1221 = vadd.f32 %v1219, %v1220
  %1222 = vadd.xlane.f32.xlu0 %v1221
  %v1223 = vpop.xlane.xlu0 %1222
  %v1224 = vsel %vm403, %v1135, 0.0
  %v1225 = vsel %vm403, %v1216, 0.0
  %v1226 = vadd.f32 %v1224, %v1225
  %1227 = vadd.xlane.f32.xlu0 %v1226
  %v1228 = vpop.xlane.xlu0 %1227
  %v1229 = vmul.f32 %v1223, 0.0625
  %v1230 = vmul.f32 %v1228, 0.0625
  %v1231 = vmul.f32 %v1130, %v1130
  %v1232 = vmul.f32 %v1135, %v1135
  %v1233 = vmul.f32 %v1211, %v1211
  %v1234 = vmul.f32 %v1216, %v1216
  %v1235 = vsel %vm403, %v1231, 0.0
  %v1236 = vsel %vm403, %v1233, 0.0
  %v1237 = vadd.f32 %v1235, %v1236
  %1238 = vadd.xlane.f32.xlu0 %v1237
  %v1239 = vpop.xlane.xlu0 %1238
  %v1240 = vsel %vm403, %v1232, 0.0
  %v1241 = vsel %vm403, %v1234, 0.0
  %v1242 = vadd.f32 %v1240, %v1241
  %1243 = vadd.xlane.f32.xlu0 %v1242
  %v1244 = vpop.xlane.xlu0 %1243
  %v1245 = vmul.f32 %v1239, 0.0625
  %v1246 = vmul.f32 %v1244, 0.0625
  %v1247 = vmul.f32 %v1229, %v1229
  %v1248 = vmul.f32 %v1230, %v1230
  %v1249 = vsub.f32 %v1245, %v1247
  %v1250 = vsub.f32 %v1246, %v1248
  %v1251 = vadd.f32 %v1249, 1e-05
  %v1252 = vadd.f32 %v1250, 1e-05
  %v1253 = vrsqrt.pop %v1251
  %v1254 = vrsqrt.pop %v1252
  %v1255 = vmul.f32 %v48, %v1253
  %v1256 = vmul.f32 %v49, %v1254
  %1258 = vset.pattern.permute.xlu0 4
  %1259 = vperm.xlu0 %1258, %v1255
  %v1260 = vpop.permute.xlu0 %1259
  %1263 = vset.pattern.permute.xlu0 4
  %1264 = vperm.xlu0 %1263, %v1256
  %v1265 = vpop.permute.xlu0 %1264
  %v1267 = vmul.f32 %v1130, %v1260
  %v1268 = vmul.f32 %v1135, %v1265
  %v1269 = vmul.f32 %v1211, %v1260
  %v1270 = vmul.f32 %v1216, %v1265
  %v1271 = vmul.f32 %v1229, %v1255
  %v1272 = vmul.f32 %v1230, %v1256
  %1275 = vrot.lane.b32.xlu0 %v1271, 1
  %v1276 = vpop.permute.xlu0 %1275
  %1277 = vrot.lane.b32.xlu0 %v1272, 1
  %v1278 = vpop.permute.xlu0 %1277
  %v1281 = vsub.f32 %v48, %v1276
  %v1282 = vsub.f32 %v49, %v1278
  %1284 = vset.pattern.permute.xlu0 5
  %1285 = vperm.xlu0 %1284, %v1281
  %v1286 = vpop.permute.xlu0 %1285
  %1289 = vset.pattern.permute.xlu0 5
  %1290 = vperm.xlu0 %1289, %v1282
  %v1291 = vpop.permute.xlu0 %1290
  %v1293 = vadd.f32 %v1267, %v1286
  %v1294 = vadd.f32 %v1268, %v1291
  %v1295 = vadd.f32 %v1269, %v1286
  %v1296 = vadd.f32 %v1270, %v1291
  %v1297 = vadd.f32 %v1293, %v20
  %v1298 = vadd.f32 %v1294, %v21
  %v1299 = vadd.f32 %v1295, %v22
  %v1300 = vadd.f32 %v1296, %v23
  %v1301 = vmax.f32 %v1297, 0.0
  %v1302 = vmax.f32 %v1298, 0.0
  %v1303 = vmax.f32 %v1299, 0.0
  %v1304 = vmax.f32 %v1300, 0.0
  %1305 = vst.msk [vmem:[%s5] sm:$0xff] %vm403, %v1301
  %1306 = vst.msk [vmem:[%s5 + $0x8] sm:$0xff] %vm403, %v1302
  %1307 = vst.msk [vmem:[%s5 + $0x10] sm:$0xff] %vm403, %v1303
  %1308 = vst.msk [vmem:[%s5 + $0x18] sm:$0xff] %vm403, %v1304
  // Predicated region
  $region22: #{tpu_custom_call.1} parent=0 // pred_check
    _
  $region23: #{tpu_custom_call.1} parent=0 // pred_check_branch
    %1310 = sbr.rel (0) target = $region25
  $region24: #{tpu_custom_call.1} parent=0 // pred_region
    _
  $region25: #{tpu_custom_call.1} parent=0 // pred_fallthru
    _
  // Predicated region
  $region26: #{tpu_custom_call.1} parent=0 // pred_check
    _
  $region27: #{tpu_custom_call.1} parent=0 // pred_check_branch
    %1312 = sbr.rel (0) target = $region29
  $region28: #{tpu_custom_call.1} parent=0 // pred_region
    _
  $region29: #{tpu_custom_call.1} parent=0 // pred_fallthru
    _

</llo_original>
